<compile_context>
chip_gen: v7x
topology: tpu7x:2x2x1
jax: 0.10.0
libtpu: 0.0.40
codegen_flags: <defaults>
</compile_context>

<pallas_src>
import functools

import jax
import jax.numpy as jnp
from jax.experimental import pallas as pl
from jax.experimental.pallas import tpu as pltpu


def _round_up(x, m):
    return ((x + m - 1) // m) * m


def _pad2d(x, rows, cols, dtype):
    out = jnp.zeros((rows, cols), dtype)
    return out.at[: x.shape[0], : x.shape[1]].set(x.astype(dtype))


def _choose_tiles(n):
    n128 = _round_up(n, 128)
    if n128 <= 256:
        tm = tk = n128
    else:
        tm, tk = 256, 512
    n_pad = _round_up(n128, max(tm, tk))
    return tm, tk, n_pad


# --------------------------------------------------------------------------------------
# Fused GIN layer kernel: sum-aggregation (tiled over the K/source axis with an f32
# accumulator; self term pre-folded into A) + MLP(Linear->ReLU->Linear, BN folded) + ReLU.
# --------------------------------------------------------------------------------------
def _gin_layer_kernel(a_ref, hsrc_ref, w1_ref, b1_ref, w2_ref, b2_ref, o_ref, acc_ref):
    k = pl.program_id(1)

    @pl.when(k == 0)
    def _():
        acc_ref[...] = jnp.zeros_like(acc_ref)

    # agg partial: (TM, TK) bf16 x (TK, F_in) bf16 -> f32 accumulate on the MXU.
    acc_ref[...] += jnp.dot(a_ref[...], hsrc_ref[...],
                            preferred_element_type=jnp.float32)

    @pl.when(k == pl.num_programs(1) - 1)
    def _():
        agg = acc_ref[...]
        # GIN apply_func MLP: Linear -> ReLU -> Linear.  Inference BatchNorm is pre-folded
        # into (w2, b2) by the wrapper.  Bias adds broadcast a single (1, F) row.
        h1 = jnp.dot(agg.astype(jnp.bfloat16), w1_ref[...],
                     preferred_element_type=jnp.float32) + b1_ref[...]
        h1 = jnp.maximum(h1, 0.0)
        h2 = jnp.dot(h1.astype(jnp.bfloat16), w2_ref[...],
                     preferred_element_type=jnp.float32) + b2_ref[...]
        # Model-level activation after BatchNorm.
        o_ref[...] = jnp.maximum(h2, 0.0).astype(o_ref.dtype)


def gin_layer(a_pad, h_pad, w1, b1, w2, b2, *, tm, tk):
    n_pad = a_pad.shape[0]
    f_in = h_pad.shape[1]
    f_hid = w1.shape[1]
    grid = (n_pad // tm, n_pad // tk)
    return pl.pallas_call(
        _gin_layer_kernel,
        out_shape=jax.ShapeDtypeStruct((n_pad, f_hid), jnp.bfloat16),
        grid_spec=pltpu.PrefetchScalarGridSpec(
            num_scalar_prefetch=0,
            grid=grid,
            in_specs=[
                pl.BlockSpec((tm, tk), lambda i, k: (i, k)),        # A_eff tile
                pl.BlockSpec((tk, f_in), lambda i, k: (k, 0)),      # H source rows (reduction)
                pl.BlockSpec((f_in, f_hid), lambda i, k: (0, 0)),   # W1 (resident)
                pl.BlockSpec((1, f_hid), lambda i, k: (0, 0)),      # b1 (resident)
                pl.BlockSpec((f_hid, f_hid), lambda i, k: (0, 0)),  # W2 * bn_scale (resident)
                pl.BlockSpec((1, f_hid), lambda i, k: (0, 0)),      # b2 folded with BN (resident)
            ],
            out_specs=pl.BlockSpec((tm, f_hid), lambda i, k: (i, 0)),
            scratch_shapes=[pltpu.VMEM((tm, f_in), jnp.float32)],
        ),
        compiler_params=pltpu.CompilerParams(
            dimension_semantics=("parallel", "arbitrary"),
        ),
    )(a_pad, h_pad, w1, b1, w2, b2)


# --------------------------------------------------------------------------------------
# Prediction head (do_train=True): plain tiled linear.
# --------------------------------------------------------------------------------------
def _linear_kernel(h_ref, w_ref, b_ref, o_ref):
    o_ref[...] = (jnp.dot(h_ref[...], w_ref[...],
                          preferred_element_type=jnp.float32)
                  + b_ref[...]).astype(o_ref.dtype)


def linear_layer(h_pad, w, b, *, tm):
    n_pad, f_in = h_pad.shape
    f_out = w.shape[1]
    return pl.pallas_call(
        _linear_kernel,
        out_shape=jax.ShapeDtypeStruct((n_pad, f_out), jnp.float32),
        grid_spec=pltpu.PrefetchScalarGridSpec(
            num_scalar_prefetch=0,
            grid=(n_pad // tm,),
            in_specs=[
                pl.BlockSpec((tm, f_in), lambda i: (i, 0)),
                pl.BlockSpec((f_in, f_out), lambda i: (0, 0)),
                pl.BlockSpec((1, f_out), lambda i: (0, 0)),
            ],
            out_specs=pl.BlockSpec((tm, f_out), lambda i: (i, 0)),
        ),
        compiler_params=pltpu.CompilerParams(dimension_semantics=("parallel",)),
    )(h_pad, w, b)


# --------------------------------------------------------------------------------------
# Full forward (wrapper): padding, bf16 casts, BatchNorm folding, per-layer kernel calls.
# Jitted so all padding / folding / pallas_calls fuse into one executable.
# --------------------------------------------------------------------------------------
@functools.partial(jax.jit, static_argnames=("do_train", "eps", "bn_eps"))
def gin_forward(adj, features, params, *, do_train=False, eps=0.0, bn_eps=1e-5):
    n = adj.shape[0]
    tm, tk, n_pad = _choose_tiles(n)

    # dgl.add_self_loop + (1+eps)*self term folded into the diagonal:
    #   (1+eps)*h + (A + I) @ h  ==  (A + (2+eps)*I) @ h
    # {0,1,2} (and 2+eps for small eps) are exactly representable / negligible error in bf16.
    a_eff = adj.astype(jnp.float32) + (2.0 + eps) * jnp.eye(n, dtype=jnp.float32)
    a_pad = _pad2d(a_eff, n_pad, n_pad, jnp.bfloat16)

    f_in = features.shape[1]
    f_in_pad = _round_up(f_in, 128)
    h = _pad2d(features, n_pad, f_in_pad, jnp.bfloat16)

    hidden = params["layers"][0][0].shape[1]
    f_hid_pad = _round_up(hidden, 128)

    for (w1, b1, w2, b2, gamma, beta, rmean, rvar) in params["layers"]:
        # Fold inference BatchNorm into the second MLP linear:
        #   BN(x @ W2 + b2) = x @ (W2 * s) + (b2 * s + t),  s = gamma/sqrt(var+eps), t = beta - mean*s
        scale = gamma / jnp.sqrt(rvar + bn_eps)
        shift = beta - rmean * scale
        w2f = w2 * scale[None, :]
        b2f = b2 * scale + shift

        fi_pad = h.shape[1]
        w1p = _pad2d(w1, fi_pad, f_hid_pad, jnp.bfloat16)
        b1p = _pad2d(b1.reshape(1, -1), 1, f_hid_pad, jnp.float32)
        w2p = _pad2d(w2f, f_hid_pad, f_hid_pad, jnp.bfloat16)
        b2p = _pad2d(b2f.reshape(1, -1), 1, f_hid_pad, jnp.float32)

        h = gin_layer(a_pad, h, w1p, b1p, w2p, b2p, tm=tm, tk=tk)

    if do_train:
        wp, bp = params["predict"]
        f_out = wp.shape[1]
        f_out_pad = _round_up(f_out, 128)
        wpp = _pad2d(wp, f_hid_pad, f_out_pad, jnp.bfloat16)
        bpp = _pad2d(bp.reshape(1, -1), 1, f_out_pad, jnp.float32)
        logits = linear_layer(h, wpp, bpp, tm=tm)
        return logits[:n, :f_out]
    return h[:n, :hidden].astype(jnp.float32)


# --------------------------------------------------------------------------------------
# Parameter init (deterministic, matching the PyTorch module's layer shapes) + f32 reference.
# --------------------------------------------------------------------------------------
def init_gin_params(key, in_feats, hidden_feats, out_feats, num_layers):
    def linear_init(k, fi, fo):
        k1, k2 = jax.random.split(k)
        s = 1.0 / jnp.sqrt(jnp.float32(fi))
        w = jax.random.uniform(k1, (fi, fo), jnp.float32, -s, s)
        b = jax.random.uniform(k2, (fo,), jnp.float32, -s, s)
        return w, b

    layers = []
    dims = [in_feats] + [hidden_feats] * num_layers
    for l in range(num_layers):
        key, k1, k2, k3, k4, k5, k6 = jax.random.split(key, 7)
        w1, b1 = linear_init(k1, dims[l], hidden_feats)
        w2, b2 = linear_init(k2, hidden_feats, hidden_feats)
        gamma = jax.random.uniform(k3, (hidden_feats,), jnp.float32, 0.5, 1.5)
        beta = 0.1 * jax.random.normal(k4, (hidden_feats,), jnp.float32)
        rmean = 0.1 * jax.random.normal(k5, (hidden_feats,), jnp.float32)
        rvar = jax.random.uniform(k6, (hidden_feats,), jnp.float32, 0.5, 1.5)
        layers.append((w1, b1, w2, b2, gamma, beta, rmean, rvar))
    key, kp = jax.random.split(key)
    wp, bp = linear_init(kp, hidden_feats, out_feats)
    return {"layers": layers, "predict": (wp, bp)}


def gin_reference(adj, features, params, *, do_train=False, eps=0.0, bn_eps=1e-5):
    n = adj.shape[0]
    a_sl = adj.astype(jnp.float32) + jnp.eye(n, dtype=jnp.float32)
    h = features.astype(jnp.float32)
    for (w1, b1, w2, b2, gamma, beta, rmean, rvar) in params["layers"]:
        agg = (1.0 + eps) * h + a_sl @ h
        h1 = jax.nn.relu(agg @ w1 + b1)
        h2 = h1 @ w2 + b2
        h = (h2 - rmean) / jnp.sqrt(rvar + bn_eps) * gamma + beta
        h = jax.nn.relu(h)
    if do_train:
        wp, bp = params["predict"]
        return h @ wp + bp
    return h


if __name__ == "__main__":
    N = 64
    IN_FEATS = 16
    HIDDEN_FEATS = 32
    OUT_FEATS = 8
    NUM_LAYERS = 2  # -> 2 GINConv layers (conv_0 + 1 extra) and 2 BatchNorms

    root = jax.random.PRNGKey(0)
    k_graph, k_feat, k_param = jax.random.split(root, 3)

    # Random undirected graph without self-loops (the forward adds them, like dgl.add_self_loop).
    upper = jax.random.bernoulli(k_graph, p=0.15, shape=(N, N)).astype(jnp.float32)
    adj = jnp.triu(upper, k=1)
    adj = adj + adj.T

    features = jax.random.normal(k_feat, (N, IN_FEATS), jnp.float32)
    params = init_gin_params(k_param, IN_FEATS, HIDDEN_FEATS, OUT_FEATS, NUM_LAYERS)

    # do_train=False (module default): returns the embedding after the last BN + ReLU.
    emb = jax.block_until_ready(gin_forward(adj, features, params, do_train=False))
    emb_ref = gin_reference(adj, features, params, do_train=False)
    assert emb.shape == (N, HIDDEN_FEATS), emb.shape
    assert emb.dtype == jnp.float32
    assert bool(jnp.all(emb >= 0.0))  # final ReLU
    rel = jnp.linalg.norm(emb - emb_ref) / (jnp.linalg.norm(emb_ref) + 1e-6)
    assert float(rel) < 5e-2, f"embedding rel err {float(rel)}"

    # do_train=True: adds the `predict` linear head.
    logits = jax.block_until_ready(gin_forward(adj, features, params, do_train=True))
    logits_ref = gin_reference(adj, features, params, do_train=True)
    assert logits.shape == (N, OUT_FEATS), logits.shape
    rel2 = jnp.linalg.norm(logits - logits_ref) / (jnp.linalg.norm(logits_ref) + 1e-6)
    assert float(rel2) < 5e-2, f"logits rel err {float(rel2)}"

    print("KERNEL_OK")
</pallas_src>

<mosaic_0001>
module attributes {stable_mosaic.version = 11 : i64} {
  func.func @_gin_layer_kernel(%arg0: i32, %arg1: i32, %arg2: memref<128x128xbf16, #tpu.memory_space<vmem>>, %arg3: memref<128x128xbf16, #tpu.memory_space<vmem>>, %arg4: memref<128x128xbf16, #tpu.memory_space<vmem>>, %arg5: memref<1x128xf32, #tpu.memory_space<vmem>>, %arg6: memref<128x128xbf16, #tpu.memory_space<vmem>>, %arg7: memref<1x128xf32, #tpu.memory_space<vmem>>, %arg8: memref<128x128xbf16, #tpu.memory_space<vmem>>, %arg9: memref<128x128xf32, #tpu.memory_space<vmem>>) attributes {dimension_semantics = [#tpu.dimension_semantics<parallel>, #tpu.dimension_semantics<arbitrary>], iteration_bounds = array<i64: 1, 1>, scalar_prefetch = 0 : i64, scratch_operands = 1 : i64, tpu.core_type = #tpu.core_type<tc>, window_params = [{transform_indices = @transform_0, window_bounds = array<i64: 128, 128>}, {transform_indices = @transform_1, window_bounds = array<i64: 128, 128>}, {pipeline_mode = #tpu.pipeline_mode<synchronous>, transform_indices = @transform_2, window_bounds = array<i64: 128, 128>}, {pipeline_mode = #tpu.pipeline_mode<synchronous>, transform_indices = @transform_3, window_bounds = array<i64: 1, 128>}, {pipeline_mode = #tpu.pipeline_mode<synchronous>, transform_indices = @transform_4, window_bounds = array<i64: 128, 128>}, {pipeline_mode = #tpu.pipeline_mode<synchronous>, transform_indices = @transform_5, window_bounds = array<i64: 1, 128>}, {transform_indices = @transform_6, window_bounds = array<i64: 128, 128>}]} {
    %c0_i32 = arith.constant 0 : i32
    %0 = arith.cmpi eq, %arg1, %c0_i32 : i32
    %1 = arith.extui %0 : i1 to i32
    %c0_i32_0 = arith.constant 0 : i32
    %2 = arith.cmpi ne, %1, %c0_i32_0 : i32
    scf.if %2 {
      %cst_10 = arith.constant 0.000000e+00 : f32
      %12 = vector.broadcast %cst_10 : f32 to vector<128x128xf32>
      %c0_11 = arith.constant 0 : index
      %c0_12 = arith.constant 0 : index
      %13 = vector.load %arg9[%c0_11, %c0_12] : memref<128x128xf32, #tpu.memory_space<vmem>>, vector<128x128xf32>
      tpu.vector_store %arg9[%c0_11, %c0_12], %12 {strides = array<i32>} : memref<128x128xf32, #tpu.memory_space<vmem>>, vector<128x128xf32>,
    } else {
    }
    %c0 = arith.constant 0 : index
    %c0_1 = arith.constant 0 : index
    %3 = vector.load %arg9[%c0, %c0_1] : memref<128x128xf32, #tpu.memory_space<vmem>>, vector<128x128xf32>
    %c0_2 = arith.constant 0 : index
    %c0_3 = arith.constant 0 : index
    %4 = vector.load %arg2[%c0_2, %c0_3] : memref<128x128xbf16, #tpu.memory_space<vmem>>, vector<128x128xbf16>
    %c0_4 = arith.constant 0 : index
    %c0_5 = arith.constant 0 : index
    %5 = vector.load %arg3[%c0_4, %c0_5] : memref<128x128xbf16, #tpu.memory_space<vmem>>, vector<128x128xbf16>
    %cst = arith.constant dense<0.000000e+00> : vector<128x128xf32>
    %6 = tpu.matmul %4, %5, %cst {dimension_numbers = #tpu.dot_dimension_numbers<[1], [0], [0], [1], [0, 0, 1, 1], [], []>} : vector<128x128xbf16>, vector<128x128xbf16>, vector<128x128xf32> -> vector<128x128xf32>
    %7 = arith.addf %3, %6 : vector<128x128xf32>
    %c0_6 = arith.constant 0 : index
    %c0_7 = arith.constant 0 : index
    %8 = vector.load %arg9[%c0_6, %c0_7] : memref<128x128xf32, #tpu.memory_space<vmem>>, vector<128x128xf32>
    tpu.vector_store %arg9[%c0_6, %c0_7], %7 {strides = array<i32>} : memref<128x128xf32, #tpu.memory_space<vmem>>, vector<128x128xf32>,
    %c0_i32_8 = arith.constant 0 : i32
    %9 = arith.cmpi eq, %arg1, %c0_i32_8 : i32
    %10 = arith.extui %9 : i1 to i32
    %c0_i32_9 = arith.constant 0 : i32
    %11 = arith.cmpi ne, %10, %c0_i32_9 : i32
    scf.if %11 {
      %c0_10 = arith.constant 0 : index
      %c0_11 = arith.constant 0 : index
      %12 = vector.load %arg9[%c0_10, %c0_11] : memref<128x128xf32, #tpu.memory_space<vmem>>, vector<128x128xf32>
      %13 = arith.truncf %12 : vector<128x128xf32> to vector<128x128xbf16>
      %c0_12 = arith.constant 0 : index
      %c0_13 = arith.constant 0 : index
      %14 = vector.load %arg4[%c0_12, %c0_13] : memref<128x128xbf16, #tpu.memory_space<vmem>>, vector<128x128xbf16>
      %cst_14 = arith.constant dense<0.000000e+00> : vector<128x128xf32>
      %15 = tpu.matmul %13, %14, %cst_14 {dimension_numbers = #tpu.dot_dimension_numbers<[1], [0], [0], [1], [0, 0, 1, 1], [], []>} : vector<128x128xbf16>, vector<128x128xbf16>, vector<128x128xf32> -> vector<128x128xf32>
      %c0_15 = arith.constant 0 : index
      %c0_16 = arith.constant 0 : index
      %16 = vector.load %arg5[%c0_15, %c0_16] : memref<1x128xf32, #tpu.memory_space<vmem>>, vector<1x128xf32>
      %17 = vector.broadcast %16 : vector<1x128xf32> to vector<128x128xf32>
      %18 = arith.addf %15, %17 : vector<128x128xf32>
      %cst_17 = arith.constant 0.000000e+00 : f32
      %19 = vector.broadcast %cst_17 : f32 to vector<128x128xf32>
      %20 = arith.maximumf %18, %19 : vector<128x128xf32>
      %21 = arith.truncf %20 : vector<128x128xf32> to vector<128x128xbf16>
      %c0_18 = arith.constant 0 : index
      %c0_19 = arith.constant 0 : index
      %22 = vector.load %arg6[%c0_18, %c0_19] : memref<128x128xbf16, #tpu.memory_space<vmem>>, vector<128x128xbf16>
      %cst_20 = arith.constant dense<0.000000e+00> : vector<128x128xf32>
      %23 = tpu.matmul %21, %22, %cst_20 {dimension_numbers = #tpu.dot_dimension_numbers<[1], [0], [0], [1], [0, 0, 1, 1], [], []>} : vector<128x128xbf16>, vector<128x128xbf16>, vector<128x128xf32> -> vector<128x128xf32>
      %c0_21 = arith.constant 0 : index
      %c0_22 = arith.constant 0 : index
      %24 = vector.load %arg7[%c0_21, %c0_22] : memref<1x128xf32, #tpu.memory_space<vmem>>, vector<1x128xf32>
      %25 = vector.broadcast %24 : vector<1x128xf32> to vector<128x128xf32>
      %26 = arith.addf %23, %25 : vector<128x128xf32>
      %cst_23 = arith.constant 0.000000e+00 : f32
      %27 = vector.broadcast %cst_23 : f32 to vector<128x128xf32>
      %28 = arith.maximumf %26, %27 : vector<128x128xf32>
      %29 = arith.truncf %28 : vector<128x128xf32> to vector<128x128xbf16>
      %c0_24 = arith.constant 0 : index
      %c0_25 = arith.constant 0 : index
      %30 = vector.load %arg8[%c0_24, %c0_25] : memref<128x128xbf16, #tpu.memory_space<vmem>>, vector<128x128xbf16>
      tpu.vector_store %arg8[%c0_24, %c0_25], %29 {strides = array<i32>} : memref<128x128xbf16, #tpu.memory_space<vmem>>, vector<128x128xbf16>,
    } else {
    }
    return
  }
  func.func @transform_0(%arg0: i32, %arg1: i32) -> (i32, i32) {
    %c0_i32 = arith.constant 0 : i32
    return %arg0, %arg1 : i32, i32
  }
  func.func @transform_1(%arg0: i32, %arg1: i32) -> (i32, i32) {
    %c0_i32 = arith.constant 0 : i32
    %c0_i32_0 = arith.constant 0 : i32
    return %arg1, %c0_i32 : i32, i32
  }
  func.func @transform_2(%arg0: i32, %arg1: i32) -> (i32, i32) {
    %c0_i32 = arith.constant 0 : i32
    %c0_i32_0 = arith.constant 0 : i32
    %c0_i32_1 = arith.constant 0 : i32
    return %c0_i32, %c0_i32_0 : i32, i32
  }
  func.func @transform_3(%arg0: i32, %arg1: i32) -> (i32, i32) {
    %c0_i32 = arith.constant 0 : i32
    %c0_i32_0 = arith.constant 0 : i32
    %c0_i32_1 = arith.constant 0 : i32
    return %c0_i32, %c0_i32_0 : i32, i32
  }
  func.func @transform_4(%arg0: i32, %arg1: i32) -> (i32, i32) {
    %c0_i32 = arith.constant 0 : i32
    %c0_i32_0 = arith.constant 0 : i32
    %c0_i32_1 = arith.constant 0 : i32
    return %c0_i32, %c0_i32_0 : i32, i32
  }
  func.func @transform_5(%arg0: i32, %arg1: i32) -> (i32, i32) {
    %c0_i32 = arith.constant 0 : i32
    %c0_i32_0 = arith.constant 0 : i32
    %c0_i32_1 = arith.constant 0 : i32
    return %c0_i32, %c0_i32_0 : i32, i32
  }
  func.func @transform_6(%arg0: i32, %arg1: i32) -> (i32, i32) {
    %c0_i32 = arith.constant 0 : i32
    %c0_i32_0 = arith.constant 0 : i32
    return %arg0, %c0_i32 : i32, i32
  }
}

</mosaic_0001>

<llo_original>
// kernel: gin_forward.2
$region0: #{gin_forward.2}
  #allocation0 [shape = 'u32[]', space=smem, size = 0x4, offset = 0x4, fixed_abs, tag = 'smem constant byte address 0x4 - core index']
  #allocation1 [shape = 'u32[144,128]{1,0:T(1,128)}', space=vmem, size = 0x12000, scoped, tag = 'internal scratch']
  #allocation2 [shape = 'f32[128,128]{1,0:T(8,128)}', space=vmem, size = 0x10000, scoped, tag = 'scratch operand']
  %s0 = inlined_call_operand.vmem [shape: bf16[128,128], index: 0, kind: input, shape index: {}]
  %s1 = inlined_call_operand.vmem [shape: bf16[128,128], index: 1, kind: input, shape index: {}]
  %s2 = inlined_call_operand.vmem [shape: bf16[128,128], index: 2, kind: input, shape index: {}]
  %s3 = inlined_call_operand.vmem [shape: f32[1,128], index: 3, kind: input, shape index: {}]
  %s4 = inlined_call_operand.vmem [shape: bf16[128,128], index: 4, kind: input, shape index: {}]
  %s5 = inlined_call_operand.vmem [shape: f32[1,128], index: 5, kind: input, shape index: {}]
  %s6 = inlined_call_operand.vmem [shape: bf16[128,128], index: 6, kind: output, shape index: {}]
  %s7 = sld [smem:[#allocation0]]
  $region42: #{gin_forward.2} parent=0
    _
  %s9 = ssub.s32 1, %s7
  %s10 = scalar_select 0, %s9, %s7
  // Predicated region
  $region2: #{gin_forward.2} parent=0 // pred_check
    _
  $region3: #{gin_forward.2} parent=0 // pred_check_branch
    %12 = sbr.rel (0) target = $region5
  $region4: #{gin_forward.2} parent=0 // pred_region
    _
  $region5: #{gin_forward.2} parent=0 // pred_fallthru
    _
  // Predicated region
  $region6: #{gin_forward.2} parent=0 // pred_check
    _
  $region7: #{gin_forward.2} parent=0 // pred_check_branch
    %14 = sbr.rel (0) target = $region9
  $region8: #{gin_forward.2} parent=0 // pred_region
    _
  $region9: #{gin_forward.2} parent=0 // pred_fallthru
    _
  // Predicated region
  $region10: #{gin_forward.2} parent=0 // pred_check
    _
  $region11: #{gin_forward.2} parent=0 // pred_check_branch
    %16 = sbr.rel (0) target = $region13
  $region12: #{gin_forward.2} parent=0 // pred_region
    _
  $region13: #{gin_forward.2} parent=0 // pred_fallthru
    _
  // Predicated region
  $region14: #{gin_forward.2} parent=0 // pred_check
    _
  $region15: #{gin_forward.2} parent=0 // pred_check_branch
    %18 = sbr.rel (0) target = $region17
  $region16: #{gin_forward.2} parent=0 // pred_region
    _
  $region17: #{gin_forward.2} parent=0 // pred_fallthru
    _
  // Predicated region
  $region18: #{gin_forward.2} parent=0 // pred_check
    _
  $region19: #{gin_forward.2} parent=0 // pred_check_branch
    %20 = sbr.rel (0) target = $region21
  $region20: #{gin_forward.2} parent=0 // pred_region
    _
  $region21: #{gin_forward.2} parent=0 // pred_fallthru
    _
  // Predicated region
  $region22: #{gin_forward.2} parent=0 // pred_check
    _
  $region23: #{gin_forward.2} parent=0 // pred_check_branch
    %22 = sbr.rel (0) target = $region25
  $region24: #{gin_forward.2} parent=0 // pred_region
    _
  $region25: #{gin_forward.2} parent=0 // pred_fallthru
    _
  %p24 = scmp.eq.s32.totalorder 0, 0
  // Predicated region
  $region26: #{gin_forward.2} parent=0 // pred_check
    %p25 = pneg %p24
  $region27: #{gin_forward.2} parent=0 // pred_check_branch
    %27 = sbr.rel (%p25) target = $region29
  $region28: #{gin_forward.2} parent=0 // pred_region
    %28 = vst [vmem:[#allocation2] sm:$0xff] 0.0
    %29 = vst [vmem:[#allocation2 + $0x8] sm:$0xff] 0.0
    %30 = vst [vmem:[#allocation2 + $0x10] sm:$0xff] 0.0
    %31 = vst [vmem:[#allocation2 + $0x18] sm:$0xff] 0.0
    %32 = vst [vmem:[#allocation2 + $0x20] sm:$0xff] 0.0
    %33 = vst [vmem:[#allocation2 + $0x28] sm:$0xff] 0.0
    %34 = vst [vmem:[#allocation2 + $0x30] sm:$0xff] 0.0
    %35 = vst [vmem:[#allocation2 + $0x38] sm:$0xff] 0.0
    %36 = vst [vmem:[#allocation2 + $0x40] sm:$0xff] 0.0
    %37 = vst [vmem:[#allocation2 + $0x48] sm:$0xff] 0.0
    %38 = vst [vmem:[#allocation2 + $0x50] sm:$0xff] 0.0
    %39 = vst [vmem:[#allocation2 + $0x58] sm:$0xff] 0.0
    %40 = vst [vmem:[#allocation2 + $0x60] sm:$0xff] 0.0
    %41 = vst [vmem:[#allocation2 + $0x68] sm:$0xff] 0.0
    %42 = vst [vmem:[#allocation2 + $0x70] sm:$0xff] 0.0
    %43 = vst [vmem:[#allocation2 + $0x78] sm:$0xff] 0.0
  $region29: #{gin_forward.2} parent=0 // pred_fallthru
    _
  %v44 = vld [vmem:[#allocation2] sm:$0xff]
  %v45 = vld [vmem:[#allocation2 + $0x8] sm:$0xff]
  %v46 = vld [vmem:[#allocation2 + $0x10] sm:$0xff]
  %v47 = vld [vmem:[#allocation2 + $0x18] sm:$0xff]
  %v48 = vld [vmem:[#allocation2 + $0x20] sm:$0xff]
  %v49 = vld [vmem:[#allocation2 + $0x28] sm:$0xff]
  %v50 = vld [vmem:[#allocation2 + $0x30] sm:$0xff]
  %v51 = vld [vmem:[#allocation2 + $0x38] sm:$0xff]
  %v52 = vld [vmem:[#allocation2 + $0x40] sm:$0xff]
  %v53 = vld [vmem:[#allocation2 + $0x48] sm:$0xff]
  %v54 = vld [vmem:[#allocation2 + $0x50] sm:$0xff]
  %v55 = vld [vmem:[#allocation2 + $0x58] sm:$0xff]
  %v56 = vld [vmem:[#allocation2 + $0x60] sm:$0xff]
  %v57 = vld [vmem:[#allocation2 + $0x68] sm:$0xff]
  %v58 = vld [vmem:[#allocation2 + $0x70] sm:$0xff]
  %v59 = vld [vmem:[#allocation2 + $0x78] sm:$0xff]
  %v60 = vld [vmem:[%s0] sm:$0xf]
  %v61 = vld [vmem:[%s0 + $0x4] sm:$0xf]
  %v62 = vld [vmem:[%s0 + $0x8] sm:$0xf]
  %v63 = vld [vmem:[%s0 + $0xc] sm:$0xf]
  %v64 = vld [vmem:[%s0 + $0x10] sm:$0xf]
  %v65 = vld [vmem:[%s0 + $0x14] sm:$0xf]
  %v66 = vld [vmem:[%s0 + $0x18] sm:$0xf]
  %v67 = vld [vmem:[%s0 + $0x1c] sm:$0xf]
  %v68 = vld [vmem:[%s0 + $0x20] sm:$0xf]
  %v69 = vld [vmem:[%s0 + $0x24] sm:$0xf]
  %v70 = vld [vmem:[%s0 + $0x28] sm:$0xf]
  %v71 = vld [vmem:[%s0 + $0x2c] sm:$0xf]
  %v72 = vld [vmem:[%s0 + $0x30] sm:$0xf]
  %v73 = vld [vmem:[%s0 + $0x34] sm:$0xf]
  %v74 = vld [vmem:[%s0 + $0x38] sm:$0xf]
  %v75 = vld [vmem:[%s0 + $0x3c] sm:$0xf]
  %v76 = vld [vmem:[%s1] sm:$0xf]
  %v77 = vld [vmem:[%s1 + $0x4] sm:$0xf]
  %v78 = vld [vmem:[%s1 + $0x8] sm:$0xf]
  %v79 = vld [vmem:[%s1 + $0xc] sm:$0xf]
  %v80 = vld [vmem:[%s1 + $0x10] sm:$0xf]
  %v81 = vld [vmem:[%s1 + $0x14] sm:$0xf]
  %v82 = vld [vmem:[%s1 + $0x18] sm:$0xf]
  %v83 = vld [vmem:[%s1 + $0x1c] sm:$0xf]
  %v84 = vld [vmem:[%s1 + $0x20] sm:$0xf]
  %v85 = vld [vmem:[%s1 + $0x24] sm:$0xf]
  %v86 = vld [vmem:[%s1 + $0x28] sm:$0xf]
  %v87 = vld [vmem:[%s1 + $0x2c] sm:$0xf]
  %v88 = vld [vmem:[%s1 + $0x30] sm:$0xf]
  %v89 = vld [vmem:[%s1 + $0x34] sm:$0xf]
  %v90 = vld [vmem:[%s1 + $0x38] sm:$0xf]
  %v91 = vld [vmem:[%s1 + $0x3c] sm:$0xf]
  %v108 = vunpack.c.l.b16 %v60
  %v109 = vunpack.c.l.b16 %v61
  %v110 = vunpack.c.l.b16 %v62
  %v111 = vunpack.c.l.b16 %v63
  %v112 = vunpack.c.l.b16 %v64
  %v113 = vunpack.c.l.b16 %v65
  %v114 = vunpack.c.l.b16 %v66
  %v115 = vunpack.c.l.b16 %v67
  %v116 = vunpack.c.l.b16 %v68
  %v117 = vunpack.c.l.b16 %v69
  %v118 = vunpack.c.l.b16 %v70
  %v119 = vunpack.c.l.b16 %v71
  %v120 = vunpack.c.l.b16 %v72
  %v121 = vunpack.c.l.b16 %v73
  %v122 = vunpack.c.l.b16 %v74
  %v123 = vunpack.c.l.b16 %v75
  %v124 = vpack.c.b16 %v109, %v108
  %v125 = vpack.c.b16 %v111, %v110
  %v126 = vpack.c.b16 %v113, %v112
  %v127 = vpack.c.b16 %v115, %v114
  %v128 = vpack.c.b16 %v117, %v116
  %v129 = vpack.c.b16 %v119, %v118
  %v130 = vpack.c.b16 %v121, %v120
  %v131 = vpack.c.b16 %v123, %v122
  %v156 = vunpack.c.l.b16 %v76
  %v157 = vunpack.c.l.b16 %v77
  %v158 = vunpack.c.l.b16 %v78
  %v159 = vunpack.c.l.b16 %v79
  %v160 = vunpack.c.l.b16 %v80
  %v161 = vunpack.c.l.b16 %v81
  %v162 = vunpack.c.l.b16 %v82
  %v163 = vunpack.c.l.b16 %v83
  %v164 = vunpack.c.l.b16 %v84
  %v165 = vunpack.c.l.b16 %v85
  %v166 = vunpack.c.l.b16 %v86
  %v167 = vunpack.c.l.b16 %v87
  %v168 = vunpack.c.l.b16 %v88
  %v169 = vunpack.c.l.b16 %v89
  %v170 = vunpack.c.l.b16 %v90
  %v171 = vunpack.c.l.b16 %v91
  %v172 = vpack.c.b16 %v157, %v156
  %v173 = vpack.c.b16 %v159, %v158
  %v174 = vpack.c.b16 %v161, %v160
  %v175 = vpack.c.b16 %v163, %v162
  %v176 = vpack.c.b16 %v165, %v164
  %v177 = vpack.c.b16 %v167, %v166
  %v178 = vpack.c.b16 %v169, %v168
  %v179 = vpack.c.b16 %v171, %v170
  %188 = vmatprep.subr.bf16.mxu0 0
  %189 = vmatpush1.bf16.msra.mxu0 %v172
  %190 = vmatprep.subr.bf16.mxu0 0
  %191 = vmatpush1.bf16.msra.mxu0 %v173
  %192 = vmatprep.subr.bf16.mxu0 0
  %193 = vmatpush1.bf16.msra.mxu0 %v174
  %194 = vmatprep.subr.bf16.mxu0 0
  %195 = vmatpush1.bf16.msra.mxu0 %v175
  %196 = vmatprep.subr.bf16.mxu0 0
  %197 = vmatpush1.bf16.msra.mxu0 %v176
  %198 = vmatprep.subr.bf16.mxu0 0
  %199 = vmatpush1.bf16.msra.mxu0 %v177
  %200 = vmatprep.subr.bf16.mxu0 0
  %201 = vmatpush1.bf16.msra.mxu0 %v178
  %202 = vmatprep.subr.bf16.mxu0 0
  %203 = vmatpush1.bf16.msra.mxu0 %v179
  %204 = vmatprep.subr.bf16.mxu0 0
  %205 = vmatpush1.bf16.msra.mxu0 0
  %206 = vmatprep.subr.bf16.mxu0 0
  %207 = vmatpush1.bf16.msra.mxu0 0
  %208 = vmatprep.subr.bf16.mxu0 0
  %209 = vmatpush1.bf16.msra.mxu0 0
  %210 = vmatprep.subr.bf16.mxu0 0
  %211 = vmatpush1.bf16.msra.mxu0 0
  %212 = vmatprep.subr.bf16.mxu0 0
  %213 = vmatpush1.bf16.msra.mxu0 0
  %214 = vmatprep.subr.bf16.mxu0 0
  %215 = vmatpush1.bf16.msra.mxu0 0
  %216 = vmatprep.subr.bf16.mxu0 0
  %217 = vmatpush1.bf16.msra.mxu0 0
  %218 = vmatprep.subr.bf16.mxu0 0
  %219 = vmatpush1.bf16.msra.mxu0 0
  %220 = vmatprep.mubr.bf16.mxu0 0
  %221 = vmatmul.mubr.bf16.gmra.mrb[0].mxu0 %v124
  %v222 = vpop.f32.mrb[0].mxu0
  %v223 = vadd.f32 0.0, %v222
  %v224 = vpop.f32.mrb[0].mxu0
  %v225 = vpop.f32.mrb[0].mxu0
  %v226 = vadd.f32 0.0, %v225
  %v227 = vpop.f32.mrb[0].mxu0
  %228 = vmatprep.mubr.bf16.mxu0 0
  %229 = vmatmul.mubr.bf16.gmra.mrb[0].mxu0 %v125
  %v230 = vpop.f32.mrb[0].mxu0
  %v231 = vadd.f32 0.0, %v230
  %v232 = vpop.f32.mrb[0].mxu0
  %v233 = vpop.f32.mrb[0].mxu0
  %v234 = vadd.f32 0.0, %v233
  %v235 = vpop.f32.mrb[0].mxu0
  %236 = vmatprep.mubr.bf16.mxu0 0
  %237 = vmatmul.mubr.bf16.gmra.mrb[0].mxu0 %v126
  %v238 = vpop.f32.mrb[0].mxu0
  %v239 = vadd.f32 0.0, %v238
  %v240 = vpop.f32.mrb[0].mxu0
  %v241 = vpop.f32.mrb[0].mxu0
  %v242 = vadd.f32 0.0, %v241
  %v243 = vpop.f32.mrb[0].mxu0
  %244 = vmatprep.mubr.bf16.mxu0 0
  %245 = vmatmul.mubr.bf16.gmra.mrb[0].mxu0 %v127
  %v246 = vpop.f32.mrb[0].mxu0
  %v247 = vadd.f32 0.0, %v246
  %v248 = vpop.f32.mrb[0].mxu0
  %v249 = vpop.f32.mrb[0].mxu0
  %v250 = vadd.f32 0.0, %v249
  %v251 = vpop.f32.mrb[0].mxu0
  %252 = vmatprep.mubr.bf16.mxu0 0
  %253 = vmatmul.mubr.bf16.gmra.mrb[0].mxu0 %v128
  %v254 = vpop.f32.mrb[0].mxu0
  %v255 = vadd.f32 0.0, %v254
  %v256 = vpop.f32.mrb[0].mxu0
  %v257 = vpop.f32.mrb[0].mxu0
  %v258 = vadd.f32 0.0, %v257
  %v259 = vpop.f32.mrb[0].mxu0
  %260 = vmatprep.mubr.bf16.mxu0 0
  %261 = vmatmul.mubr.bf16.gmra.mrb[0].mxu0 %v129
  %v262 = vpop.f32.mrb[0].mxu0
  %v263 = vadd.f32 0.0, %v262
  %v264 = vpop.f32.mrb[0].mxu0
  %v265 = vpop.f32.mrb[0].mxu0
  %v266 = vadd.f32 0.0, %v265
  %v267 = vpop.f32.mrb[0].mxu0
  %268 = vmatprep.mubr.bf16.mxu0 0
  %269 = vmatmul.mubr.bf16.gmra.mrb[0].mxu0 %v130
  %v270 = vpop.f32.mrb[0].mxu0
  %v271 = vadd.f32 0.0, %v270
  %v272 = vpop.f32.mrb[0].mxu0
  %v273 = vpop.f32.mrb[0].mxu0
  %v274 = vadd.f32 0.0, %v273
  %v275 = vpop.f32.mrb[0].mxu0
  %276 = vmatprep.mubr.bf16.mxu0 0
  %277 = vmatmul.mubr.bf16.gmra.mrb[0].mxu0 %v131
  %v278 = vpop.f32.mrb[0].mxu0
  %v279 = vadd.f32 0.0, %v278
  %v280 = vpop.f32.mrb[0].mxu0
  %v281 = vpop.f32.mrb[0].mxu0
  %v282 = vadd.f32 0.0, %v281
  %v283 = vpop.f32.mrb[0].mxu0
  %284 = vdwg.mxu0
  %v285 = vadd.f32 %v44, %v223
  %v286 = vadd.f32 %v45, %v226
  %v287 = vadd.f32 %v46, %v231
  %v288 = vadd.f32 %v47, %v234
  %v289 = vadd.f32 %v48, %v239
  %v290 = vadd.f32 %v49, %v242
  %v291 = vadd.f32 %v50, %v247
  %v292 = vadd.f32 %v51, %v250
  %v293 = vadd.f32 %v52, %v255
  %v294 = vadd.f32 %v53, %v258
  %v295 = vadd.f32 %v54, %v263
  %v296 = vadd.f32 %v55, %v266
  %v297 = vadd.f32 %v56, %v271
  %v298 = vadd.f32 %v57, %v274
  %v299 = vadd.f32 %v58, %v279
  %v300 = vadd.f32 %v59, %v282
  %301 = vst [vmem:[#allocation2] sm:$0xff] %v285
  %302 = vst [vmem:[#allocation2 + $0x8] sm:$0xff] %v286
  %303 = vst [vmem:[#allocation2 + $0x10] sm:$0xff] %v287
  %304 = vst [vmem:[#allocation2 + $0x18] sm:$0xff] %v288
  %305 = vst [vmem:[#allocation2 + $0x20] sm:$0xff] %v289
  %306 = vst [vmem:[#allocation2 + $0x28] sm:$0xff] %v290
  %307 = vst [vmem:[#allocation2 + $0x30] sm:$0xff] %v291
  %308 = vst [vmem:[#allocation2 + $0x38] sm:$0xff] %v292
  %309 = vst [vmem:[#allocation2 + $0x40] sm:$0xff] %v293
  %310 = vst [vmem:[#allocation2 + $0x48] sm:$0xff] %v294
  %311 = vst [vmem:[#allocation2 + $0x50] sm:$0xff] %v295
  %312 = vst [vmem:[#allocation2 + $0x58] sm:$0xff] %v296
  %313 = vst [vmem:[#allocation2 + $0x60] sm:$0xff] %v297
  %314 = vst [vmem:[#allocation2 + $0x68] sm:$0xff] %v298
  %315 = vst [vmem:[#allocation2 + $0x70] sm:$0xff] %v299
  %316 = vst [vmem:[#allocation2 + $0x78] sm:$0xff] %v300
  // Predicated region
  $region30: #{gin_forward.2} parent=0 // pred_check
    %p317 = pneg %p24
  $region31: #{gin_forward.2} parent=0 // pred_check_branch
    %319 = sbr.rel (%p317) target = $region33
  $region32: #{gin_forward.2} parent=0 // pred_region
    %v320 = vld [vmem:[#allocation2] sm:$0xff]
    %v321 = vld [vmem:[#allocation2 + $0x8] sm:$0xff]
    %v322 = vld [vmem:[#allocation2 + $0x10] sm:$0xff]
    %v323 = vld [vmem:[#allocation2 + $0x18] sm:$0xff]
    %v324 = vld [vmem:[#allocation2 + $0x20] sm:$0xff]
    %v325 = vld [vmem:[#allocation2 + $0x28] sm:$0xff]
    %v326 = vld [vmem:[#allocation2 + $0x30] sm:$0xff]
    %v327 = vld [vmem:[#allocation2 + $0x38] sm:$0xff]
    %v328 = vld [vmem:[#allocation2 + $0x40] sm:$0xff]
    %v329 = vld [vmem:[#allocation2 + $0x48] sm:$0xff]
    %v330 = vld [vmem:[#allocation2 + $0x50] sm:$0xff]
    %v331 = vld [vmem:[#allocation2 + $0x58] sm:$0xff]
    %v332 = vld [vmem:[#allocation2 + $0x60] sm:$0xff]
    %v333 = vld [vmem:[#allocation2 + $0x68] sm:$0xff]
    %v334 = vld [vmem:[#allocation2 + $0x70] sm:$0xff]
    %v335 = vld [vmem:[#allocation2 + $0x78] sm:$0xff]
    %v336 = vpack.c.bf16 %v321, %v320
    %v337 = vpack.c.bf16 %v323, %v322
    %v338 = vpack.c.bf16 %v325, %v324
    %v339 = vpack.c.bf16 %v327, %v326
    %v340 = vpack.c.bf16 %v329, %v328
    %v341 = vpack.c.bf16 %v331, %v330
    %v342 = vpack.c.bf16 %v333, %v332
    %v343 = vpack.c.bf16 %v335, %v334
    %v344 = vld [vmem:[%s2] sm:$0xf]
    %v345 = vld [vmem:[%s2 + $0x4] sm:$0xf]
    %v346 = vld [vmem:[%s2 + $0x8] sm:$0xf]
    %v347 = vld [vmem:[%s2 + $0xc] sm:$0xf]
    %v348 = vld [vmem:[%s2 + $0x10] sm:$0xf]
    %v349 = vld [vmem:[%s2 + $0x14] sm:$0xf]
    %v350 = vld [vmem:[%s2 + $0x18] sm:$0xf]
    %v351 = vld [vmem:[%s2 + $0x1c] sm:$0xf]
    %v352 = vld [vmem:[%s2 + $0x20] sm:$0xf]
    %v353 = vld [vmem:[%s2 + $0x24] sm:$0xf]
    %v354 = vld [vmem:[%s2 + $0x28] sm:$0xf]
    %v355 = vld [vmem:[%s2 + $0x2c] sm:$0xf]
    %v356 = vld [vmem:[%s2 + $0x30] sm:$0xf]
    %v357 = vld [vmem:[%s2 + $0x34] sm:$0xf]
    %v358 = vld [vmem:[%s2 + $0x38] sm:$0xf]
    %v359 = vld [vmem:[%s2 + $0x3c] sm:$0xf]
    %v360 = vld [vmem:[%s3] sm:$0x1]
    %v362 = vlaneseq
    %v363 = vshrl.u32 %v362, 7
    %v364 = vsub.s32 0, %v363
    %v365 = vrot.slane %v360, %v364
    %v383 = vunpack.c.l.b16 %v344
    %v384 = vunpack.c.l.b16 %v345
    %v385 = vunpack.c.l.b16 %v346
    %v386 = vunpack.c.l.b16 %v347
    %v387 = vunpack.c.l.b16 %v348
    %v388 = vunpack.c.l.b16 %v349
    %v389 = vunpack.c.l.b16 %v350
    %v390 = vunpack.c.l.b16 %v351
    %v391 = vunpack.c.l.b16 %v352
    %v392 = vunpack.c.l.b16 %v353
    %v393 = vunpack.c.l.b16 %v354
    %v394 = vunpack.c.l.b16 %v355
    %v395 = vunpack.c.l.b16 %v356
    %v396 = vunpack.c.l.b16 %v357
    %v397 = vunpack.c.l.b16 %v358
    %v398 = vunpack.c.l.b16 %v359
    %v399 = vpack.c.b16 %v384, %v383
    %v400 = vpack.c.b16 %v386, %v385
    %v401 = vpack.c.b16 %v388, %v387
    %v402 = vpack.c.b16 %v390, %v389
    %v403 = vpack.c.b16 %v392, %v391
    %v404 = vpack.c.b16 %v394, %v393
    %v405 = vpack.c.b16 %v396, %v395
    %v406 = vpack.c.b16 %v398, %v397
    %415 = vmatprep.subr.bf16.mxu0 0
    %416 = vmatpush1.bf16.msra.mxu0 %v399
    %417 = vmatprep.subr.bf16.mxu0 0
    %418 = vmatpush1.bf16.msra.mxu0 %v400
    %419 = vmatprep.subr.bf16.mxu0 0
    %420 = vmatpush1.bf16.msra.mxu0 %v401
    %421 = vmatprep.subr.bf16.mxu0 0
    %422 = vmatpush1.bf16.msra.mxu0 %v402
    %423 = vmatprep.subr.bf16.mxu0 0
    %424 = vmatpush1.bf16.msra.mxu0 %v403
    %425 = vmatprep.subr.bf16.mxu0 0
    %426 = vmatpush1.bf16.msra.mxu0 %v404
    %427 = vmatprep.subr.bf16.mxu0 0
    %428 = vmatpush1.bf16.msra.mxu0 %v405
    %429 = vmatprep.subr.bf16.mxu0 0
    %430 = vmatpush1.bf16.msra.mxu0 %v406
    %431 = vmatprep.subr.bf16.mxu0 0
    %432 = vmatpush1.bf16.msra.mxu0 0
    %433 = vmatprep.subr.bf16.mxu0 0
    %434 = vmatpush1.bf16.msra.mxu0 0
    %435 = vmatprep.subr.bf16.mxu0 0
    %436 = vmatpush1.bf16.msra.mxu0 0
    %437 = vmatprep.subr.bf16.mxu0 0
    %438 = vmatpush1.bf16.msra.mxu0 0
    %439 = vmatprep.subr.bf16.mxu0 0
    %440 = vmatpush1.bf16.msra.mxu0 0
    %441 = vmatprep.subr.bf16.mxu0 0
    %442 = vmatpush1.bf16.msra.mxu0 0
    %443 = vmatprep.subr.bf16.mxu0 0
    %444 = vmatpush1.bf16.msra.mxu0 0
    %445 = vmatprep.subr.bf16.mxu0 0
    %446 = vmatpush1.bf16.msra.mxu0 0
    %447 = vmatprep.mubr.bf16.mxu0 0
    %448 = vmatmul.mubr.bf16.gmra.mrb[0].mxu0 %v336
    %v449 = vpop.f32.mrb[0].mxu0
    %v450 = vadd.f32 %v365, %v449
    %v451 = vpop.f32.mrb[0].mxu0
    %v452 = vpop.f32.mrb[0].mxu0
    %v453 = vadd.f32 %v365, %v452
    %v454 = vpop.f32.mrb[0].mxu0
    %455 = vmatprep.mubr.bf16.mxu0 0
    %456 = vmatmul.mubr.bf16.gmra.mrb[0].mxu0 %v337
    %v457 = vpop.f32.mrb[0].mxu0
    %v458 = vadd.f32 %v365, %v457
    %v459 = vpop.f32.mrb[0].mxu0
    %v460 = vpop.f32.mrb[0].mxu0
    %v461 = vadd.f32 %v365, %v460
    %v462 = vpop.f32.mrb[0].mxu0
    %463 = vmatprep.mubr.bf16.mxu0 0
    %464 = vmatmul.mubr.bf16.gmra.mrb[0].mxu0 %v338
    %v465 = vpop.f32.mrb[0].mxu0
    %v466 = vadd.f32 %v365, %v465
    %v467 = vpop.f32.mrb[0].mxu0
    %v468 = vpop.f32.mrb[0].mxu0
    %v469 = vadd.f32 %v365, %v468
    %v470 = vpop.f32.mrb[0].mxu0
    %471 = vmatprep.mubr.bf16.mxu0 0
    %472 = vmatmul.mubr.bf16.gmra.mrb[0].mxu0 %v339
    %v473 = vpop.f32.mrb[0].mxu0
    %v474 = vadd.f32 %v365, %v473
    %v475 = vpop.f32.mrb[0].mxu0
    %v476 = vpop.f32.mrb[0].mxu0
    %v477 = vadd.f32 %v365, %v476
    %v478 = vpop.f32.mrb[0].mxu0
    %479 = vmatprep.mubr.bf16.mxu0 0
    %480 = vmatmul.mubr.bf16.gmra.mrb[0].mxu0 %v340
    %v481 = vpop.f32.mrb[0].mxu0
    %v482 = vadd.f32 %v365, %v481
    %v483 = vpop.f32.mrb[0].mxu0
    %v484 = vpop.f32.mrb[0].mxu0
    %v485 = vadd.f32 %v365, %v484
    %v486 = vpop.f32.mrb[0].mxu0
    %487 = vmatprep.mubr.bf16.mxu0 0
    %488 = vmatmul.mubr.bf16.gmra.mrb[0].mxu0 %v341
    %v489 = vpop.f32.mrb[0].mxu0
    %v490 = vadd.f32 %v365, %v489
    %v491 = vpop.f32.mrb[0].mxu0
    %v492 = vpop.f32.mrb[0].mxu0
    %v493 = vadd.f32 %v365, %v492
    %v494 = vpop.f32.mrb[0].mxu0
    %495 = vmatprep.mubr.bf16.mxu0 0
    %496 = vmatmul.mubr.bf16.gmra.mrb[0].mxu0 %v342
    %v497 = vpop.f32.mrb[0].mxu0
    %v498 = vadd.f32 %v365, %v497
    %v499 = vpop.f32.mrb[0].mxu0
    %v500 = vpop.f32.mrb[0].mxu0
    %v501 = vadd.f32 %v365, %v500
    %v502 = vpop.f32.mrb[0].mxu0
    %503 = vmatprep.mubr.bf16.mxu0 0
    %504 = vmatmul.mubr.bf16.gmra.mrb[0].mxu0 %v343
    %v505 = vpop.f32.mrb[0].mxu0
    %v506 = vadd.f32 %v365, %v505
    %v507 = vpop.f32.mrb[0].mxu0
    %v508 = vpop.f32.mrb[0].mxu0
    %v509 = vadd.f32 %v365, %v508
    %v510 = vpop.f32.mrb[0].mxu0
    %511 = vdwg.mxu0
    %v512 = vmax.f32 %v450, 0.0
    %v513 = vmax.f32 %v453, 0.0
    %v514 = vmax.f32 %v458, 0.0
    %v515 = vmax.f32 %v461, 0.0
    %v516 = vmax.f32 %v466, 0.0
    %v517 = vmax.f32 %v469, 0.0
    %v518 = vmax.f32 %v474, 0.0
    %v519 = vmax.f32 %v477, 0.0
    %v520 = vmax.f32 %v482, 0.0
    %v521 = vmax.f32 %v485, 0.0
    %v522 = vmax.f32 %v490, 0.0
    %v523 = vmax.f32 %v493, 0.0
    %v524 = vmax.f32 %v498, 0.0
    %v525 = vmax.f32 %v501, 0.0
    %v526 = vmax.f32 %v506, 0.0
    %v527 = vmax.f32 %v509, 0.0
    %v528 = vpack.c.bf16 %v513, %v512
    %v529 = vpack.c.bf16 %v515, %v514
    %v530 = vpack.c.bf16 %v517, %v516
    %v531 = vpack.c.bf16 %v519, %v518
    %v532 = vpack.c.bf16 %v521, %v520
    %v533 = vpack.c.bf16 %v523, %v522
    %v534 = vpack.c.bf16 %v525, %v524
    %v535 = vpack.c.bf16 %v527, %v526
    %v536 = vld [vmem:[%s4] sm:$0xf]
    %v537 = vld [vmem:[%s4 + $0x4] sm:$0xf]
    %v538 = vld [vmem:[%s4 + $0x8] sm:$0xf]
    %v539 = vld [vmem:[%s4 + $0xc] sm:$0xf]
    %v540 = vld [vmem:[%s4 + $0x10] sm:$0xf]
    %v541 = vld [vmem:[%s4 + $0x14] sm:$0xf]
    %v542 = vld [vmem:[%s4 + $0x18] sm:$0xf]
    %v543 = vld [vmem:[%s4 + $0x1c] sm:$0xf]
    %v544 = vld [vmem:[%s4 + $0x20] sm:$0xf]
    %v545 = vld [vmem:[%s4 + $0x24] sm:$0xf]
    %v546 = vld [vmem:[%s4 + $0x28] sm:$0xf]
    %v547 = vld [vmem:[%s4 + $0x2c] sm:$0xf]
    %v548 = vld [vmem:[%s4 + $0x30] sm:$0xf]
    %v549 = vld [vmem:[%s4 + $0x34] sm:$0xf]
    %v550 = vld [vmem:[%s4 + $0x38] sm:$0xf]
    %v551 = vld [vmem:[%s4 + $0x3c] sm:$0xf]
    %v552 = vld [vmem:[%s5] sm:$0x1]
    %v554 = vlaneseq
    %v555 = vshrl.u32 %v554, 7
    %v556 = vsub.s32 0, %v555
    %v557 = vrot.slane %v552, %v556
    %v575 = vunpack.c.l.b16 %v536
    %v576 = vunpack.c.l.b16 %v537
    %v577 = vunpack.c.l.b16 %v538
    %v578 = vunpack.c.l.b16 %v539
    %v579 = vunpack.c.l.b16 %v540
    %v580 = vunpack.c.l.b16 %v541
    %v581 = vunpack.c.l.b16 %v542
    %v582 = vunpack.c.l.b16 %v543
    %v583 = vunpack.c.l.b16 %v544
    %v584 = vunpack.c.l.b16 %v545
    %v585 = vunpack.c.l.b16 %v546
    %v586 = vunpack.c.l.b16 %v547
    %v587 = vunpack.c.l.b16 %v548
    %v588 = vunpack.c.l.b16 %v549
    %v589 = vunpack.c.l.b16 %v550
    %v590 = vunpack.c.l.b16 %v551
    %v591 = vpack.c.b16 %v576, %v575
    %v592 = vpack.c.b16 %v578, %v577
    %v593 = vpack.c.b16 %v580, %v579
    %v594 = vpack.c.b16 %v582, %v581
    %v595 = vpack.c.b16 %v584, %v583
    %v596 = vpack.c.b16 %v586, %v585
    %v597 = vpack.c.b16 %v588, %v587
    %v598 = vpack.c.b16 %v590, %v589
    %607 = vmatprep.subr.bf16.mxu0 0
    %608 = vmatpush1.bf16.msra.mxu0 %v591
    %609 = vmatprep.subr.bf16.mxu0 0
    %610 = vmatpush1.bf16.msra.mxu0 %v592
    %611 = vmatprep.subr.bf16.mxu0 0
    %612 = vmatpush1.bf16.msra.mxu0 %v593
    %613 = vmatprep.subr.bf16.mxu0 0
    %614 = vmatpush1.bf16.msra.mxu0 %v594
    %615 = vmatprep.subr.bf16.mxu0 0
    %616 = vmatpush1.bf16.msra.mxu0 %v595
    %617 = vmatprep.subr.bf16.mxu0 0
    %618 = vmatpush1.bf16.msra.mxu0 %v596
    %619 = vmatprep.subr.bf16.mxu0 0
    %620 = vmatpush1.bf16.msra.mxu0 %v597
    %621 = vmatprep.subr.bf16.mxu0 0
    %622 = vmatpush1.bf16.msra.mxu0 %v598
    %623 = vmatprep.subr.bf16.mxu0 0
    %624 = vmatpush1.bf16.msra.mxu0 0
    %625 = vmatprep.subr.bf16.mxu0 0
    %626 = vmatpush1.bf16.msra.mxu0 0
    %627 = vmatprep.subr.bf16.mxu0 0
    %628 = vmatpush1.bf16.msra.mxu0 0
    %629 = vmatprep.subr.bf16.mxu0 0
    %630 = vmatpush1.bf16.msra.mxu0 0
    %631 = vmatprep.subr.bf16.mxu0 0
    %632 = vmatpush1.bf16.msra.mxu0 0
    %633 = vmatprep.subr.bf16.mxu0 0
    %634 = vmatpush1.bf16.msra.mxu0 0
    %635 = vmatprep.subr.bf16.mxu0 0
    %636 = vmatpush1.bf16.msra.mxu0 0
    %637 = vmatprep.subr.bf16.mxu0 0
    %638 = vmatpush1.bf16.msra.mxu0 0
    %639 = vmatprep.mubr.bf16.mxu0 0
    %640 = vmatmul.mubr.bf16.gmra.mrb[0].mxu0 %v528
    %v641 = vpop.f32.mrb[0].mxu0
    %v642 = vadd.f32 %v557, %v641
    %v643 = vpop.f32.mrb[0].mxu0
    %v644 = vpop.f32.mrb[0].mxu0
    %v645 = vadd.f32 %v557, %v644
    %v646 = vpop.f32.mrb[0].mxu0
    %647 = vmatprep.mubr.bf16.mxu0 0
    %648 = vmatmul.mubr.bf16.gmra.mrb[0].mxu0 %v529
    %v649 = vpop.f32.mrb[0].mxu0
    %v650 = vadd.f32 %v557, %v649
    %v651 = vpop.f32.mrb[0].mxu0
    %v652 = vpop.f32.mrb[0].mxu0
    %v653 = vadd.f32 %v557, %v652
    %v654 = vpop.f32.mrb[0].mxu0
    %655 = vmatprep.mubr.bf16.mxu0 0
    %656 = vmatmul.mubr.bf16.gmra.mrb[0].mxu0 %v530
    %v657 = vpop.f32.mrb[0].mxu0
    %v658 = vadd.f32 %v557, %v657
    %v659 = vpop.f32.mrb[0].mxu0
    %v660 = vpop.f32.mrb[0].mxu0
    %v661 = vadd.f32 %v557, %v660
    %v662 = vpop.f32.mrb[0].mxu0
    %663 = vmatprep.mubr.bf16.mxu0 0
    %664 = vmatmul.mubr.bf16.gmra.mrb[0].mxu0 %v531
    %v665 = vpop.f32.mrb[0].mxu0
    %v666 = vadd.f32 %v557, %v665
    %v667 = vpop.f32.mrb[0].mxu0
    %v668 = vpop.f32.mrb[0].mxu0
    %v669 = vadd.f32 %v557, %v668
    %v670 = vpop.f32.mrb[0].mxu0
    %671 = vmatprep.mubr.bf16.mxu0 0
    %672 = vmatmul.mubr.bf16.gmra.mrb[0].mxu0 %v532
    %v673 = vpop.f32.mrb[0].mxu0
    %v674 = vadd.f32 %v557, %v673
    %v675 = vpop.f32.mrb[0].mxu0
    %v676 = vpop.f32.mrb[0].mxu0
    %v677 = vadd.f32 %v557, %v676
    %v678 = vpop.f32.mrb[0].mxu0
    %679 = vmatprep.mubr.bf16.mxu0 0
    %680 = vmatmul.mubr.bf16.gmra.mrb[0].mxu0 %v533
    %v681 = vpop.f32.mrb[0].mxu0
    %v682 = vadd.f32 %v557, %v681
    %v683 = vpop.f32.mrb[0].mxu0
    %v684 = vpop.f32.mrb[0].mxu0
    %v685 = vadd.f32 %v557, %v684
    %v686 = vpop.f32.mrb[0].mxu0
    %687 = vmatprep.mubr.bf16.mxu0 0
    %688 = vmatmul.mubr.bf16.gmra.mrb[0].mxu0 %v534
    %v689 = vpop.f32.mrb[0].mxu0
    %v690 = vadd.f32 %v557, %v689
    %v691 = vpop.f32.mrb[0].mxu0
    %v692 = vpop.f32.mrb[0].mxu0
    %v693 = vadd.f32 %v557, %v692
    %v694 = vpop.f32.mrb[0].mxu0
    %695 = vmatprep.mubr.bf16.mxu0 0
    %696 = vmatmul.mubr.bf16.gmra.mrb[0].mxu0 %v535
    %v697 = vpop.f32.mrb[0].mxu0
    %v698 = vadd.f32 %v557, %v697
    %v699 = vpop.f32.mrb[0].mxu0
    %v700 = vpop.f32.mrb[0].mxu0
    %v701 = vadd.f32 %v557, %v700
    %v702 = vpop.f32.mrb[0].mxu0
    %703 = vdwg.mxu0
    %v704 = vmax.f32 %v642, 0.0
    %v705 = vmax.f32 %v645, 0.0
    %v706 = vmax.f32 %v650, 0.0
    %v707 = vmax.f32 %v653, 0.0
    %v708 = vmax.f32 %v658, 0.0
    %v709 = vmax.f32 %v661, 0.0
    %v710 = vmax.f32 %v666, 0.0
    %v711 = vmax.f32 %v669, 0.0
    %v712 = vmax.f32 %v674, 0.0
    %v713 = vmax.f32 %v677, 0.0
    %v714 = vmax.f32 %v682, 0.0
    %v715 = vmax.f32 %v685, 0.0
    %v716 = vmax.f32 %v690, 0.0
    %v717 = vmax.f32 %v693, 0.0
    %v718 = vmax.f32 %v698, 0.0
    %v719 = vmax.f32 %v701, 0.0
    %v720 = vpack.c.bf16 %v705, %v704
    %v721 = vpack.c.bf16 %v707, %v706
    %v722 = vpack.c.bf16 %v709, %v708
    %v723 = vpack.c.bf16 %v711, %v710
    %v724 = vpack.c.bf16 %v713, %v712
    %v725 = vpack.c.bf16 %v715, %v714
    %v726 = vpack.c.bf16 %v717, %v716
    %v727 = vpack.c.bf16 %v719, %v718
    %v736 = vunpack.c.l.b16 %v720
    %v737 = vunpack.c.h.b16 %v720
    %v738 = vunpack.c.l.b16 %v721
    %v739 = vunpack.c.h.b16 %v721
    %v740 = vunpack.c.l.b16 %v722
    %v741 = vunpack.c.h.b16 %v722
    %v742 = vunpack.c.l.b16 %v723
    %v743 = vunpack.c.h.b16 %v723
    %v744 = vunpack.c.l.b16 %v724
    %v745 = vunpack.c.h.b16 %v724
    %v746 = vunpack.c.l.b16 %v725
    %v747 = vunpack.c.h.b16 %v725
    %v748 = vunpack.c.l.b16 %v726
    %v749 = vunpack.c.h.b16 %v726
    %v750 = vunpack.c.l.b16 %v727
    %v751 = vunpack.c.h.b16 %v727
    %v752 = vpack.c.b16 %v736, %v736
    %v753 = vpack.c.b16 %v737, %v737
    %v754 = vpack.c.b16 %v738, %v738
    %v755 = vpack.c.b16 %v739, %v739
    %v756 = vpack.c.b16 %v740, %v740
    %v757 = vpack.c.b16 %v741, %v741
    %v758 = vpack.c.b16 %v742, %v742
    %v759 = vpack.c.b16 %v743, %v743
    %v760 = vpack.c.b16 %v744, %v744
    %v761 = vpack.c.b16 %v745, %v745
    %v762 = vpack.c.b16 %v746, %v746
    %v763 = vpack.c.b16 %v747, %v747
    %v764 = vpack.c.b16 %v748, %v748
    %v765 = vpack.c.b16 %v749, %v749
    %v766 = vpack.c.b16 %v750, %v750
    %v767 = vpack.c.b16 %v751, %v751
    %784 = vst [vmem:[%s6] sm:$0xf] %v752
    %785 = vst [vmem:[%s6 + $0x4] sm:$0xf] %v753
    %786 = vst [vmem:[%s6 + $0x8] sm:$0xf] %v754
    %787 = vst [vmem:[%s6 + $0xc] sm:$0xf] %v755
    %788 = vst [vmem:[%s6 + $0x10] sm:$0xf] %v756
    %789 = vst [vmem:[%s6 + $0x14] sm:$0xf] %v757
    %790 = vst [vmem:[%s6 + $0x18] sm:$0xf] %v758
    %791 = vst [vmem:[%s6 + $0x1c] sm:$0xf] %v759
    %792 = vst [vmem:[%s6 + $0x20] sm:$0xf] %v760
    %793 = vst [vmem:[%s6 + $0x24] sm:$0xf] %v761
    %794 = vst [vmem:[%s6 + $0x28] sm:$0xf] %v762
    %795 = vst [vmem:[%s6 + $0x2c] sm:$0xf] %v763
    %796 = vst [vmem:[%s6 + $0x30] sm:$0xf] %v764
    %797 = vst [vmem:[%s6 + $0x34] sm:$0xf] %v765
    %798 = vst [vmem:[%s6 + $0x38] sm:$0xf] %v766
    %799 = vst [vmem:[%s6 + $0x3c] sm:$0xf] %v767
  $region33: #{gin_forward.2} parent=0 // pred_fallthru
    _
  // Predicated region
  $region34: #{gin_forward.2} parent=0 // pred_check
    _
  $region35: #{gin_forward.2} parent=0 // pred_check_branch
    %801 = sbr.rel (0) target = $region37
  $region36: #{gin_forward.2} parent=0 // pred_region
    _
  $region37: #{gin_forward.2} parent=0 // pred_fallthru
    _
  // Predicated region
  $region38: #{gin_forward.2} parent=0 // pred_check
    _
  $region39: #{gin_forward.2} parent=0 // pred_check_branch
    %803 = sbr.rel (0) target = $region41
  $region40: #{gin_forward.2} parent=0 // pred_region
    _
  $region41: #{gin_forward.2} parent=0 // pred_fallthru
    _

</llo_original>
